<compile_context>
chip_gen: v5e
topology: v5e:2x2
jax: 0.10.0
libtpu: 0.0.40
codegen_flags: <defaults>
</compile_context>

<pallas_src>
import functools

import jax
import jax.numpy as jnp
from jax.experimental import pallas as pl
from jax.experimental.pallas import tpu as pltpu


_INV_SQRT2 = 0.7071067811865476


def _ff_kernel(x_ref, w1t_ref, b1_ref, w2t_ref, b2_ref, o_ref):
    # x_ref:   (d, tl)      channels-first input tile (L on the lane axis)
    # w1t_ref: (d_exp, d)   first linear weight, [out, in]
    # b1_ref:  (d_exp, 1)   f32 (pre-cast in wrapper)
    # w2t_ref: (d, d_exp)   second linear weight, [out, in]
    # b2_ref:  (d, 1)       f32 (pre-cast in wrapper)
    # o_ref:   (d, tl)
    x = x_ref[...]                                   # native dtype -> MXU
    h = jnp.dot(w1t_ref[...], x, preferred_element_type=jnp.float32)
    h = h + b1_ref[...]                              # f32 accumulate
    # Exact (erf-based) GELU, matching torch.nn.GELU() default, in f32.
    h = 0.5 * h * (1.0 + jax.lax.erf(h * _INV_SQRT2))
    # Feed the MXU in the weights' storage dtype.  Note: if x is bf16 but the
    # weights are f32, this silently runs the second matmul in f32 (perf trap,
    # not a correctness issue) — pass bf16 weights to stay on the bf16 MXU.
    h = h.astype(w2t_ref.dtype)
    y = jnp.dot(w2t_ref[...], h, preferred_element_type=jnp.float32)
    y = y + b2_ref[...]
    o_ref[...] = y.astype(o_ref.dtype)


def _vmem_estimate_bytes(d, d_exp, tl, x_bytes, w_bytes, o_bytes):
    """Rough per-step VMEM working set (used for tile sizing & vmem limit)."""
    xy = 2 * d * tl * (x_bytes + o_bytes)            # double-buffered x / y tiles
    wts = 2 * d * d_exp * w_bytes + (d_exp + d) * 4  # single-buffered weights + f32 biases
    scratch = d_exp * tl * 8                         # f32 GELU intermediate (conservative)
    return xy + wts + scratch


def ff_block_forward(x_bhl, w1, b1, w2, b2, *, tile_l=None):
    """FFBlock forward (transposed=True convention).

    Args:
      x_bhl: [B, d_model, L] input.
      w1:    [d_model, d_model*expand]
      b1:    [d_model*expand]
      w2:    [d_model*expand, d_model]
      b2:    [d_model]
      tile_l: optional lane-tile size (multiple of 128); auto-chosen from
        d_model if None.
    Returns:
      (y, None) with y of shape [B, d_model, L].
    """
    B, d, L = x_bhl.shape
    d_exp = w1.shape[1]
    assert w1.shape == (d, d_exp) and w2.shape == (d_exp, d)
    assert b1.shape == (d_exp,) and b2.shape == (d,)

    # --- Tile-size selection -------------------------------------------------
    # Default tile_l scales inversely with d_model so the ~0.35us per-step
    # overhead is amortized in the mem-bound small-d regime.
    if tile_l is None:
        tile_l = 2048 if d <= 128 else (1024 if d <= 512 else 512)
    tl = max(128, 128 * (int(tile_l) // 128))        # lane-aligned

    x_bytes = jnp.dtype(x_bhl.dtype).itemsize
    w_bytes = jnp.dtype(w1.dtype).itemsize

    # Shrink tl until the working set fits comfortably under the smallest
    # physical VMEM across targets (v7x: 64 MiB per TensorCore).
    _BUDGET = 40 << 20
    while tl > 128 and _vmem_estimate_bytes(d, d_exp, tl, x_bytes, w_bytes,
                                            x_bytes) > _BUDGET:
        tl = max(128, 128 * ((tl // 2) // 128))

    if L <= tl:
        tl, n_l = L, 1                   # single full-extent L block
    else:
        n_l = pl.cdiv(L, tl)             # ragged last block handled by Pallas

    est = _vmem_estimate_bytes(d, d_exp, tl, x_bytes, w_bytes, x_bytes)
    # Explicit scoped-VMEM limit: v5e default is 16 MiB, v6e/v7x 32 MiB; cap
    # at v7x's 64 MiB physical.
    vmem_limit = int(min(max(est + (8 << 20), 32 << 20), 64 << 20))

    # --- One-time tiny weight prep (negligible vs. [B, d, L] activations) ----
    w1t = w1.T                                        # [d_exp, d]
    w2t = w2.T                                        # [d, d_exp]
    b1c = b1.astype(jnp.float32).reshape(d_exp, 1)
    b2c = b2.astype(jnp.float32).reshape(d, 1)

    # TODO(synk): for very large d_model (>= ~1024) add a d_exp-reduction grid
    # axis with an f32 VMEM accumulator instead of holding both full weights
    # resident; and chunk the GELU over tl sub-blocks to bound vreg pressure.
    y = pl.pallas_call(
        _ff_kernel,
        out_shape=jax.ShapeDtypeStruct((B, d, L), x_bhl.dtype),
        grid_spec=pltpu.PrefetchScalarGridSpec(
            num_scalar_prefetch=0,
            grid=(B, n_l),
            in_specs=[
                # Activation tile: double-buffered (default) for DMA overlap.
                pl.BlockSpec((None, d, tl), lambda b, l: (b, 0, l)),
                # Weights / biases: constant index_map -> single-buffer them
                # (double-buffering buys no overlap, just 2x VMEM).
                pl.BlockSpec((d_exp, d), lambda b, l: (0, 0),
                             pipeline_mode=pl.Buffered(1)),
                pl.BlockSpec((d_exp, 1), lambda b, l: (0, 0),
                             pipeline_mode=pl.Buffered(1)),
                pl.BlockSpec((d, d_exp), lambda b, l: (0, 0),
                             pipeline_mode=pl.Buffered(1)),
                pl.BlockSpec((d, 1), lambda b, l: (0, 0),
                             pipeline_mode=pl.Buffered(1)),
            ],
            out_specs=pl.BlockSpec((None, d, tl), lambda b, l: (b, 0, l)),
        ),
        compiler_params=pltpu.CompilerParams(
            dimension_semantics=("parallel", "parallel"),
            vmem_limit_bytes=vmem_limit),
    )(x_bhl, w1t, b1c, w2t, b2c)

    return y, None


def _reference_forward(x_bhl, w1, b1, w2, b2):
    """Pure-JAX reference (same math as the PyTorch module), all-f32."""
    x = x_bhl.astype(jnp.float32)
    h = jnp.einsum("bdl,de->bel", x, w1.astype(jnp.float32))
    h = h + b1.astype(jnp.float32)[None, :, None]
    h = 0.5 * h * (1.0 + jax.lax.erf(h / jnp.sqrt(2.0)))
    y = jnp.einsum("bel,ed->bdl", h, w2.astype(jnp.float32))
    y = y + b2.astype(jnp.float32)[None, :, None]
    return y


if __name__ == "__main__":
    # Small shapes consistent with FFBlock(d_model, expand=2, transposed=True):
    # x: [B, d_model, L]
    B, d_model, L, expand = 2, 16, 64, 2
    d_exp = d_model * expand

    key = jax.random.PRNGKey(0)
    k_x, k_w1, k_b1, k_w2, k_b2, k_x2 = jax.random.split(key, 6)

    x = jax.random.normal(k_x, (B, d_model, L), dtype=jnp.float32)
    # Conv1d(kernel_size=1) weights stored transposed as [in, out] for matmul
    # (a real Conv1d weight is [out, in, 1]).
    w1 = jax.random.normal(k_w1, (d_model, d_exp), dtype=jnp.float32) * (
        1.0 / jnp.sqrt(float(d_model)))
    b1 = jax.random.normal(k_b1, (d_exp,), dtype=jnp.float32) * 0.01
    w2 = jax.random.normal(k_w2, (d_exp, d_model), dtype=jnp.float32) * (
        1.0 / jnp.sqrt(float(d_exp)))
    b2 = jax.random.normal(k_b2, (d_model,), dtype=jnp.float32) * 0.01

    y_ref = _reference_forward(x, w1, b1, w2, b2)

    # 1) f32, L fits in a single full-extent L block.
    y, state = ff_block_forward(x, w1, b1, w2, b2)
    y = jax.block_until_ready(y)
    assert state is None
    assert y.shape == (B, d_model, L)
    assert jnp.allclose(y, y_ref.astype(y.dtype), atol=1e-4, rtol=1e-4), \
        "f32 mismatch vs reference"

    # 2) Ragged L (L % 128 != 0, L % tile_l != 0): exercises the masked last
    #    L block — no pad / slice round-trips over the activation.
    L2 = 200
    x2 = jax.random.normal(k_x2, (B, d_model, L2), dtype=jnp.float32)
    y2, _ = ff_block_forward(x2, w1, b1, w2, b2, tile_l=128)
    y2 = jax.block_until_ready(y2)
    y2_ref = _reference_forward(x2, w1, b1, w2, b2)
    assert y2.shape == (B, d_model, L2)
    assert jnp.allclose(y2, y2_ref.astype(y2.dtype), atol=1e-4, rtol=1e-4), \
        "ragged-L mismatch vs reference"

    # 3) bf16 end-to-end (bf16-native MXU path); loose tolerance vs f32 ref.
    xb = x.astype(jnp.bfloat16)
    y3, _ = ff_block_forward(xb,
                             w1.astype(jnp.bfloat16), b1.astype(jnp.bfloat16),
                             w2.astype(jnp.bfloat16), b2.astype(jnp.bfloat16))
    y3 = jax.block_until_ready(y3)
    assert y3.dtype == jnp.bfloat16 and y3.shape == (B, d_model, L)
    assert jnp.allclose(y3.astype(jnp.float32), y_ref, atol=2e-1, rtol=1e-1), \
        "bf16 mismatch vs reference"

    print("KERNEL_OK")
</pallas_src>

<mosaic_0001>
module attributes {stable_mosaic.version = 11 : i64} {
  func.func @_ff_kernel(%arg0: i32, %arg1: i32, %arg2: memref<1x16x64xf32, #tpu.memory_space<vmem>>, %arg3: memref<32x16xf32, #tpu.memory_space<vmem>>, %arg4: memref<32x1xf32, #tpu.memory_space<vmem>>, %arg5: memref<16x32xf32, #tpu.memory_space<vmem>>, %arg6: memref<16x1xf32, #tpu.memory_space<vmem>>, %arg7: memref<1x16x64xf32, #tpu.memory_space<vmem>>) attributes {dimension_semantics = [#tpu.dimension_semantics<parallel>, #tpu.dimension_semantics<parallel>], iteration_bounds = array<i64: 2, 1>, scalar_prefetch = 0 : i64, scratch_operands = 0 : i64, tpu.core_type = #tpu.core_type<tc>, window_params = [{transform_indices = @transform_0, window_bounds = array<i64: 1, 16, 64>}, {pipeline_mode = #tpu.pipeline_mode<synchronous>, transform_indices = @transform_1, window_bounds = array<i64: 32, 16>}, {pipeline_mode = #tpu.pipeline_mode<synchronous>, transform_indices = @transform_2, window_bounds = array<i64: 32, 1>}, {pipeline_mode = #tpu.pipeline_mode<synchronous>, transform_indices = @transform_3, window_bounds = array<i64: 16, 32>}, {pipeline_mode = #tpu.pipeline_mode<synchronous>, transform_indices = @transform_4, window_bounds = array<i64: 16, 1>}, {transform_indices = @transform_5, window_bounds = array<i64: 1, 16, 64>}]} {
    %c0 = arith.constant 0 : index
    %c0_0 = arith.constant 0 : index
    %c0_1 = arith.constant 0 : index
    %0 = vector.load %arg2[%c0, %c0_0, %c0_1] : memref<1x16x64xf32, #tpu.memory_space<vmem>>, vector<1x16x64xf32>
    %1 = vector.shape_cast %0 : vector<1x16x64xf32> to vector<16x64xf32>
    %c0_2 = arith.constant 0 : index
    %c0_3 = arith.constant 0 : index
    %2 = vector.load %arg3[%c0_2, %c0_3] : memref<32x16xf32, #tpu.memory_space<vmem>>, vector<32x16xf32>
    %cst = arith.constant dense<0.000000e+00> : vector<32x64xf32>
    %3 = tpu.matmul %2, %1, %cst {dimension_numbers = #tpu.dot_dimension_numbers<[1], [0], [0], [1], [0, 0, 1, 1], [], []>} : vector<32x16xf32>, vector<16x64xf32>, vector<32x64xf32> -> vector<32x64xf32>
    %c0_4 = arith.constant 0 : index
    %c0_5 = arith.constant 0 : index
    %4 = vector.load %arg4[%c0_4, %c0_5] : memref<32x1xf32, #tpu.memory_space<vmem>>, vector<32x1xf32>
    %5 = vector.broadcast %4 : vector<32x1xf32> to vector<32x64xf32>
    %6 = arith.addf %3, %5 : vector<32x64xf32>
    %cst_6 = arith.constant 5.000000e-01 : f32
    %7 = vector.broadcast %cst_6 : f32 to vector<32x64xf32>
    %8 = arith.mulf %7, %6 : vector<32x64xf32>
    %cst_7 = arith.constant 0.707106769 : f32
    %9 = vector.broadcast %cst_7 : f32 to vector<32x64xf32>
    %10 = arith.mulf %6, %9 : vector<32x64xf32>
    %11 = math.erf %10 : vector<32x64xf32>
    %cst_8 = arith.constant 1.000000e+00 : f32
    %12 = vector.broadcast %cst_8 : f32 to vector<32x64xf32>
    %13 = arith.addf %12, %11 : vector<32x64xf32>
    %14 = arith.mulf %8, %13 : vector<32x64xf32>
    %c0_9 = arith.constant 0 : index
    %c0_10 = arith.constant 0 : index
    %15 = vector.load %arg5[%c0_9, %c0_10] : memref<16x32xf32, #tpu.memory_space<vmem>>, vector<16x32xf32>
    %cst_11 = arith.constant dense<0.000000e+00> : vector<16x64xf32>
    %16 = tpu.matmul %15, %14, %cst_11 {dimension_numbers = #tpu.dot_dimension_numbers<[1], [0], [0], [1], [0, 0, 1, 1], [], []>} : vector<16x32xf32>, vector<32x64xf32>, vector<16x64xf32> -> vector<16x64xf32>
    %c0_12 = arith.constant 0 : index
    %c0_13 = arith.constant 0 : index
    %17 = vector.load %arg6[%c0_12, %c0_13] : memref<16x1xf32, #tpu.memory_space<vmem>>, vector<16x1xf32>
    %18 = vector.broadcast %17 : vector<16x1xf32> to vector<16x64xf32>
    %19 = arith.addf %16, %18 : vector<16x64xf32>
    %c0_14 = arith.constant 0 : index
    %c0_15 = arith.constant 0 : index
    %c0_16 = arith.constant 0 : index
    %20 = vector.load %arg7[%c0_14, %c0_15, %c0_16] : memref<1x16x64xf32, #tpu.memory_space<vmem>>, vector<1x16x64xf32>
    %21 = vector.shape_cast %20 : vector<1x16x64xf32> to vector<16x64xf32>
    %22 = vector.shape_cast %19 : vector<16x64xf32> to vector<1x16x64xf32>
    tpu.vector_store %arg7[%c0_14, %c0_15, %c0_16], %22 {strides = array<i32>} : memref<1x16x64xf32, #tpu.memory_space<vmem>>, vector<1x16x64xf32>,
    return
  }
  func.func @transform_0(%arg0: i32, %arg1: i32) -> (i32, i32, i32) {
    %c0_i32 = arith.constant 0 : i32
    %c0_i32_0 = arith.constant 0 : i32
    return %arg0, %c0_i32, %arg1 : i32, i32, i32
  }
  func.func @transform_1(%arg0: i32, %arg1: i32) -> (i32, i32) {
    %c0_i32 = arith.constant 0 : i32
    %c0_i32_0 = arith.constant 0 : i32
    %c0_i32_1 = arith.constant 0 : i32
    return %c0_i32, %c0_i32_0 : i32, i32
  }
  func.func @transform_2(%arg0: i32, %arg1: i32) -> (i32, i32) {
    %c0_i32 = arith.constant 0 : i32
    %c0_i32_0 = arith.constant 0 : i32
    %c0_i32_1 = arith.constant 0 : i32
    return %c0_i32, %c0_i32_0 : i32, i32
  }
  func.func @transform_3(%arg0: i32, %arg1: i32) -> (i32, i32) {
    %c0_i32 = arith.constant 0 : i32
    %c0_i32_0 = arith.constant 0 : i32
    %c0_i32_1 = arith.constant 0 : i32
    return %c0_i32, %c0_i32_0 : i32, i32
  }
  func.func @transform_4(%arg0: i32, %arg1: i32) -> (i32, i32) {
    %c0_i32 = arith.constant 0 : i32
    %c0_i32_0 = arith.constant 0 : i32
    %c0_i32_1 = arith.constant 0 : i32
    return %c0_i32, %c0_i32_0 : i32, i32
  }
  func.func @transform_5(%arg0: i32, %arg1: i32) -> (i32, i32, i32) {
    %c0_i32 = arith.constant 0 : i32
    %c0_i32_0 = arith.constant 0 : i32
    return %arg0, %c0_i32, %arg1 : i32, i32, i32
  }
}

</mosaic_0001>

<llo_original>
// kernel: tpu_custom_call.1
$region0: #{tpu_custom_call.1}
  #allocation0 [shape = 'u32[]', space=smem, size = 0x4, offset = 0x4, fixed_abs, tag = 'smem constant byte address 0x4 - core index']
  #allocation1 [shape = 'u32[72,128]{1,0:T(1,128)}', space=vmem, size = 0x9000, scoped, tag = 'internal scratch']
  %s0 = inlined_call_operand.vmem [shape: f32[2,16,64], index: 0, kind: input, shape index: {}]
  %s1 = inlined_call_operand.vmem [shape: f32[32,16], index: 1, kind: input, shape index: {}]
  %s2 = inlined_call_operand.vmem [shape: f32[32,1], index: 2, kind: input, shape index: {}]
  %s3 = inlined_call_operand.vmem [shape: f32[16,32], index: 3, kind: input, shape index: {}]
  %s4 = inlined_call_operand.vmem [shape: f32[16,1], index: 4, kind: input, shape index: {}]
  %s5 = inlined_call_operand.hbm [shape: f32[2,16,64], index: 5, kind: output, shape index: {}]
  %s6 = sld [smem:[#allocation0]]
  $region53: #{tpu_custom_call.1} parent=0
    _
  %s8 = ssub.s32 1, %s6
  %s9 = scalar_select 0, %s8, %s6
  $region1: #{tpu_custom_call.1} parent=0
    #allocation2 [shape = 'u8[16384]{0}', space=vmem, size = 0x4000, scoped, tag = 'output window, operand 0']
    #allocation3 [shape = 's32[2]{0}', space=sflag, size = 0x8, scoped, tag = 'scoped memory for tpu_custom_call.1']
    %10 = vsyncpa [#allocation3], 0
    %s11 = scalar_lea.sflag [#allocation3], 1
    %12 = vsyncpa %s11, 0
    loop: start=0, step=1, limit=4
    $region2: #{tpu_custom_call.1} parent=1 // loop_pre_header
      _
    $region3: #{tpu_custom_call.1} parent=1 // loop_header
      %s14 = sphi 0, %s18
      %p15 = scmp.ge.s32.totalorder %s14, 4
      %s21 = sphi 0, %s33
      %s22 = sphi 0, %s29
      %s23 = sphi 0, %s21
      %s24 = sphi 0, %s22
      %s25 = sphi 0, %s23
      %s26 = sphi 0, %s24
      %s38 = sphi 0, %s40
      %s41 = sphi 0, %s38
      %s42 = sphi 0, %s41
      %s58 = sphi 0, %s42
      %s62 = sphi 0, %s62
      %s64 = sphi 0, %s62
      %s65 = sphi 0, %s64
      %s79 = sphi 0, %s65
      %s83 = sphi 0, %s83
      %s85 = sphi 0, %s83
      %s86 = sphi 0, %s85
      %s100 = sphi 0, %s86
      %s104 = sphi 0, %s104
      %s106 = sphi 0, %s104
      %s107 = sphi 0, %s106
      %s121 = sphi 0, %s107
      %s125 = sphi 0, %s125
      %s127 = sphi 0, %s125
      %s128 = sphi 0, %s127
      %s142 = sphi 0, %s128
      %s150 = sphi 0, %s152
      %s153 = sphi 0, %s150
      %s154 = sphi 0, %s153
      %s170 = sphi 0, %s154
    $region4: #{tpu_custom_call.1} parent=1 // loop_header_branch
      %17 = sbr.rel (%p15) target = $region8
    $region5: #{tpu_custom_call.1} parent=1 // loop_body
      %s19 = ssub.s32 %s14, 1
      %s20 = ssub.s32 %s14, 2
      %s27 = sadd.s32 1, %s22
      %p28 = scmp.ge.s32.totalorder %s27, 1
      %s29 = scalar_select %p28, 0, %s27
      %s30 = sadd.s32 1, %s21
      %s31 = scalar_select %p28, %s30, %s21
      %p32 = scmp.ge.s32.totalorder %s31, 2
      %s33 = scalar_select %p32, 0, %s31
      %s34 = ssub.s32 %s21, %s33
      %s35 = ssub.s32 %s22, %s29
      %s36 = sor.u32 %s34, %s35
      %p37 = scmp.eq.s32.totalorder %s36, 0
      %s39 = sadd.s32 %s38, 1
      %s40 = scalar_select %p37, %s38, %s39
      %p43 = pneg %p37
      %p44 = scmp.eq.s32.totalorder %s14, 1
      %p45 = por %p43, %p44
      %p46 = scmp.ne.s32.totalorder %s38, %s41
      %p47 = scmp.eq.s32.totalorder %s14, 0
      %p48 = por %p46, %p47
      %p49 = scmp.ne.s32.totalorder %s38, %s41
      %p50 = scmp.eq.s32.totalorder %s19, 1
      %p51 = por %p49, %p50
      %p52 = scmp.ne.s32.totalorder %s41, %s42
      %p53 = scmp.eq.s32.totalorder %s19, 0
      %p54 = por %p52, %p53
      %p55 = scmp.ne.s32.totalorder %s41, %s42
      %p56 = scmp.eq.s32.totalorder %s20, 1
      %p57 = por %p55, %p56
      %p59 = scmp.ne.s32.totalorder %s42, %s58
      %p60 = scmp.eq.s32.totalorder %s20, 0
      %p61 = por %p59, %p60
      %s63 = sadd.s32 %s62, 1
      %p66 = scmp.eq.s32.totalorder %s14, 1
      %p67 = scmp.ne.s32.totalorder %s62, %s64
      %p68 = scmp.eq.s32.totalorder %s14, 0
      %p69 = por %p67, %p68
      %p70 = scmp.ne.s32.totalorder %s62, %s64
      %p71 = scmp.eq.s32.totalorder %s19, 1
      %p72 = por %p70, %p71
      %p73 = scmp.ne.s32.totalorder %s64, %s65
      %p74 = scmp.eq.s32.totalorder %s19, 0
      %p75 = por %p73, %p74
      %p76 = scmp.ne.s32.totalorder %s64, %s65
      %p77 = scmp.eq.s32.totalorder %s20, 1
      %p78 = por %p76, %p77
      %p80 = scmp.ne.s32.totalorder %s65, %s79
      %p81 = scmp.eq.s32.totalorder %s20, 0
      %p82 = por %p80, %p81
      %s84 = sadd.s32 %s83, 1
      %p87 = scmp.eq.s32.totalorder %s14, 1
      %p88 = scmp.ne.s32.totalorder %s83, %s85
      %p89 = scmp.eq.s32.totalorder %s14, 0
      %p90 = por %p88, %p89
      %p91 = scmp.ne.s32.totalorder %s83, %s85
      %p92 = scmp.eq.s32.totalorder %s19, 1
      %p93 = por %p91, %p92
      %p94 = scmp.ne.s32.totalorder %s85, %s86
      %p95 = scmp.eq.s32.totalorder %s19, 0
      %p96 = por %p94, %p95
      %p97 = scmp.ne.s32.totalorder %s85, %s86
      %p98 = scmp.eq.s32.totalorder %s20, 1
      %p99 = por %p97, %p98
      %p101 = scmp.ne.s32.totalorder %s86, %s100
      %p102 = scmp.eq.s32.totalorder %s20, 0
      %p103 = por %p101, %p102
      %s105 = sadd.s32 %s104, 1
      %p108 = scmp.eq.s32.totalorder %s14, 1
      %p109 = scmp.ne.s32.totalorder %s104, %s106
      %p110 = scmp.eq.s32.totalorder %s14, 0
      %p111 = por %p109, %p110
      %p112 = scmp.ne.s32.totalorder %s104, %s106
      %p113 = scmp.eq.s32.totalorder %s19, 1
      %p114 = por %p112, %p113
      %p115 = scmp.ne.s32.totalorder %s106, %s107
      %p116 = scmp.eq.s32.totalorder %s19, 0
      %p117 = por %p115, %p116
      %p118 = scmp.ne.s32.totalorder %s106, %s107
      %p119 = scmp.eq.s32.totalorder %s20, 1
      %p120 = por %p118, %p119
      %p122 = scmp.ne.s32.totalorder %s107, %s121
      %p123 = scmp.eq.s32.totalorder %s20, 0
      %p124 = por %p122, %p123
      %s126 = sadd.s32 %s125, 1
      %p129 = scmp.eq.s32.totalorder %s14, 1
      %p130 = scmp.ne.s32.totalorder %s125, %s127
      %p131 = scmp.eq.s32.totalorder %s14, 0
      %p132 = por %p130, %p131
      %p133 = scmp.ne.s32.totalorder %s125, %s127
      %p134 = scmp.eq.s32.totalorder %s19, 1
      %p135 = por %p133, %p134
      %p136 = scmp.ne.s32.totalorder %s127, %s128
      %p137 = scmp.eq.s32.totalorder %s19, 0
      %p138 = por %p136, %p137
      %p139 = scmp.ne.s32.totalorder %s127, %s128
      %p140 = scmp.eq.s32.totalorder %s20, 1
      %p141 = por %p139, %p140
      %p143 = scmp.ne.s32.totalorder %s128, %s142
      %p144 = scmp.eq.s32.totalorder %s20, 0
      %p145 = por %p143, %p144
      %s146 = ssub.s32 %s21, %s33
      %s147 = ssub.s32 %s22, %s29
      %s148 = sor.u32 %s146, %s147
      %p149 = scmp.eq.s32.totalorder %s148, 0
      %s151 = sadd.s32 %s150, 1
      %s152 = scalar_select %p149, %s150, %s151
      %p155 = pneg %p149
      %p156 = scmp.eq.s32.totalorder %s14, 1
      %p157 = por %p155, %p156
      %p158 = scmp.ne.s32.totalorder %s150, %s153
      %p159 = scmp.eq.s32.totalorder %s14, 0
      %p160 = por %p158, %p159
      %p161 = scmp.ne.s32.totalorder %s150, %s153
      %p162 = scmp.eq.s32.totalorder %s19, 1
      %p163 = por %p161, %p162
      %p164 = scmp.ne.s32.totalorder %s153, %s154
      %p165 = scmp.eq.s32.totalorder %s19, 0
      %p166 = por %p164, %p165
      %p167 = scmp.ne.s32.totalorder %s153, %s154
      %p168 = scmp.eq.s32.totalorder %s20, 1
      %p169 = por %p167, %p168
      %p171 = scmp.ne.s32.totalorder %s154, %s170
      %p172 = scmp.eq.s32.totalorder %s20, 0
      %p173 = por %p171, %p172
      %p174 = scmp.le.s32.totalorder 1, %s14
      %p175 = scmp.lt.s32.totalorder %s14, 3
      %p176 = pnand %p174, %p175
      %p177 = pneg %p176
      // Predicated region
      $region9: #{tpu_custom_call.1} parent=5 // pred_check
        _
      $region10: #{tpu_custom_call.1} parent=5 // pred_check_branch
        %179 = sbr.rel (%p176) target = $region12
      $region11: #{tpu_custom_call.1} parent=5 // pred_region
        %s180 = ssub.s32 %s14, 1
        // Predicated region
        $region13: #{tpu_custom_call.1} parent=11 // pred_check
          %p181 = pneg %p75
        $region14: #{tpu_custom_call.1} parent=11 // pred_check_branch
          %183 = sbr.rel (%p181) target = $region16
        $region15: #{tpu_custom_call.1} parent=11 // pred_region
          _
        $region16: #{tpu_custom_call.1} parent=11 // pred_fallthru
          _
        // Predicated region
        $region17: #{tpu_custom_call.1} parent=11 // pred_check
          %p184 = pneg %p96
        $region18: #{tpu_custom_call.1} parent=11 // pred_check_branch
          %186 = sbr.rel (%p184) target = $region20
        $region19: #{tpu_custom_call.1} parent=11 // pred_region
          _
        $region20: #{tpu_custom_call.1} parent=11 // pred_fallthru
          _
        // Predicated region
        $region21: #{tpu_custom_call.1} parent=11 // pred_check
          %p187 = pneg %p117
        $region22: #{tpu_custom_call.1} parent=11 // pred_check_branch
          %189 = sbr.rel (%p187) target = $region24
        $region23: #{tpu_custom_call.1} parent=11 // pred_region
          _
        $region24: #{tpu_custom_call.1} parent=11 // pred_fallthru
          _
        // Predicated region
        $region25: #{tpu_custom_call.1} parent=11 // pred_check
          %p190 = pneg %p138
        $region26: #{tpu_custom_call.1} parent=11 // pred_check_branch
          %192 = sbr.rel (%p190) target = $region28
        $region27: #{tpu_custom_call.1} parent=11 // pred_region
          _
        $region28: #{tpu_custom_call.1} parent=11 // pred_fallthru
          _
      $region12: #{tpu_custom_call.1} parent=5 // pred_fallthru
        _
      %p193 = scmp.lt.s32.totalorder %s14, 2
      // Predicated region
      $region29: #{tpu_custom_call.1} parent=5 // pred_check
        %p194 = pneg %p193
      $region30: #{tpu_custom_call.1} parent=5 // pred_check_branch
        %196 = sbr.rel (%p194) target = $region32
      $region31: #{tpu_custom_call.1} parent=5 // pred_region
        // Predicated region
        $region33: #{tpu_custom_call.1} parent=31 // pred_check
          %p197 = pneg %p48
        $region34: #{tpu_custom_call.1} parent=31 // pred_check_branch
          %199 = sbr.rel (%p197) target = $region36
        $region35: #{tpu_custom_call.1} parent=31 // pred_region
          %p200 = scmp.lt.s32.totalorder %s21, 1
          %s201 = scalar_select %p200, %s21, 1
          %p202 = scmp.lt.s32.totalorder %s22, 0
          %s203 = scalar_select %p202, %s22, 0
          %s204 = smul.addr %s201, 2
          %s205 = sadd.s32 %s203, %s204
          %s206 = smul.addr %s205, 8
          %s207 = scalar_lea.vmem %s0, %s206
        $region36: #{tpu_custom_call.1} parent=31 // pred_fallthru
          _
      $region32: #{tpu_custom_call.1} parent=5 // pred_fallthru
        _
      %p208 = scmp.le.s32.totalorder 1, %s14
      %p209 = scmp.lt.s32.totalorder %s14, 3
      %p210 = pnand %p208, %p209
      %p211 = pneg %p210
      // Predicated region
      $region37: #{tpu_custom_call.1} parent=5 // pred_check
        _
      $region38: #{tpu_custom_call.1} parent=5 // pred_check_branch
        %213 = sbr.rel (%p210) target = $region40
      $region39: #{tpu_custom_call.1} parent=5 // pred_region
        %s214 = ssub.s32 %s14, 1
        %p215 = scmp.lt.s32.totalorder %s23, 1
        %s216 = scalar_select %p215, %s23, 1
        %p217 = scmp.lt.s32.totalorder %s24, 0
        %s218 = scalar_select %p217, %s24, 0
        %s219 = smul.addr %s216, 2
        %s220 = sadd.s32 %s218, %s219
        %s221 = smul.addr %s220, 8
        %s222 = scalar_lea.vmem %s0, %s221
        %p223 = pneg %p54
        %p224 = pneg %p51
        %p225 = pneg %p75
        %p226 = pneg %p72
        %p227 = pneg %p96
        %p228 = pneg %p93
        %p229 = pneg %p117
        %p230 = pneg %p114
        %p231 = pneg %p138
        %p232 = pneg %p135
        %p233 = pneg %p166
        %p234 = pneg %p163
        %s235 = sand.u32 %s153, 1
        %s236 = scalar_lea.sflag [#allocation3], %s235
        %s237 = sand.u32 %s153, 1
        %s238 = smul.addr %s237, 16
        %s239 = scalar_lea.vmem [#allocation2], %s238
        %p240 = scmp.lt.s32.totalorder %s23, 1
        %s241 = scalar_select %p240, %s23, 1
        %p242 = scmp.lt.s32.totalorder %s24, 0
        %s243 = scalar_select %p242, %s24, 0
        %s244 = smul.addr %s241, 2
        %s245 = sadd.s32 %s243, %s244
        %s246 = smul.addr %s245, 8
        %s247 = scalar_lea.vmem %s0, %s246
        %v248 = vld [vmem:[%s247] sm:$0xff]
        %v249 = vld [vmem:[%s247 + $0x8] sm:$0xff]
        %v250 = vld [vmem:[%s1] sm:$0xff]
        %v251 = vld [vmem:[%s1 + $0x8] sm:$0xff]
        %v252 = vld [vmem:[%s1 + $0x10] sm:$0xff]
        %v253 = vld [vmem:[%s1 + $0x18] sm:$0xff]
        %v254 = vld [vmem:[%s2] sm:$0xff]
        %v255 = vld [vmem:[%s2 + $0x8] sm:$0xff]
        %v256 = vld [vmem:[%s2 + $0x10] sm:$0xff]
        %v257 = vld [vmem:[%s2 + $0x18] sm:$0xff]
        %259 = vset.pattern.permute.xlu0 0
        %260 = vperm.xlu0 %259, %v254
        %v261 = vpop.permute.xlu0 %260
        %264 = vset.pattern.permute.xlu0 0
        %265 = vperm.xlu0 %264, %v255
        %v266 = vpop.permute.xlu0 %265
        %269 = vset.pattern.permute.xlu0 0
        %270 = vperm.xlu0 %269, %v256
        %v271 = vpop.permute.xlu0 %270
        %274 = vset.pattern.permute.xlu0 0
        %275 = vperm.xlu0 %274, %v257
        %v276 = vpop.permute.xlu0 %275
        %vm278 = vcmask 130048
        %v280 = vsel %vm278, %v250, 0
        %v283 = vsel %vm278, %v251, 0
        %v286 = vsel %vm278, %v252, 0
        %v289 = vsel %vm278, %v253, 0
        %291 = vmatpush.msra.mxu0 0.0
        %292 = vmatpush.msra.mxu0 0.0
        %293 = vmatpush.msra.mxu0 0.0
        %294 = vmatpush.msra.mxu0 0.0
        %295 = vmatpush.msra.mxu0 0.0
        %296 = vmatpush.msra.mxu0 0.0
        %297 = vmatpush.msra.mxu0 0.0
        %298 = vmatpush.msra.mxu0 0.0
        %299 = vmatpush.msra.mxu0 0.0
        %300 = vmatpush.msra.mxu0 0.0
        %301 = vmatpush.msra.mxu0 0.0
        %302 = vmatpush.msra.mxu0 0.0
        %303 = vmatpush.msra.mxu0 0.0
        %304 = vmatpush.msra.mxu0 0.0
        %305 = vmatpush.msra.mxu0 %v249
        %306 = vmatpush.msra.mxu0 %v248
        %307 = vmatmul.f32.gmra.mxu0 %v280
        %v308 = vpop.f32.mrf.mxu0
        %v309 = vadd.f32 %v261, %v308
        %310 = vmatmul.f32.gmra.mxu0 %v283
        %v311 = vpop.f32.mrf.mxu0
        %v312 = vadd.f32 %v266, %v311
        %313 = vmatmul.f32.gmra.mxu0 %v286
        %v314 = vpop.f32.mrf.mxu0
        %v315 = vadd.f32 %v271, %v314
        %316 = vmatmul.f32.gmra.mxu0 %v289
        %v317 = vpop.f32.mrf.mxu0
        %v318 = vadd.f32 %v276, %v317
        %319 = vdwg.mxu0
        %v320 = vmul.f32 %v309, 0.5
        %v321 = vmul.f32 %v312, 0.5
        %v322 = vmul.f32 %v315, 0.5
        %v323 = vmul.f32 %v318, 0.5
        %v324 = vmul.f32 %v309, 0.70710677
        %v325 = vmul.f32 %v312, 0.70710677
        %v326 = vmul.f32 %v315, 0.70710677
        %v327 = vmul.f32 %v318, 0.70710677
        %v328 = vmul.f32 %v324, %v324
        %v329 = vmin.f32 16.0, %v328
        %v330 = vmul.f32 %v329, 2.1237322e-06
        %v331 = vadd.f32 %v330, 0.00028619796
        %v332 = vmul.f32 %v329, %v331
        %v333 = vadd.f32 %v332, 0.0036580483
        %v334 = vmul.f32 %v329, %v333
        %v335 = vadd.f32 %v334, 0.05243302
        %v336 = vmul.f32 %v329, %v335
        %v337 = vadd.f32 %v336, 0.18741608
        %v338 = vmul.f32 %v329, %v337
        %v339 = vadd.f32 %v338, 1.1283791
        %v340 = vmul.f32 %v324, %v339
        %v341 = vmul.f32 %v329, 3.8918573e-05
        %v342 = vadd.f32 %v341, 0.001143296
        %v343 = vmul.f32 %v329, %v342
        %v344 = vadd.f32 %v343, 0.014752088
        %v345 = vmul.f32 %v329, %v344
        %v346 = vadd.f32 %v345, 0.112945676
        %v347 = vmul.f32 %v329, %v346
        %v348 = vadd.f32 %v347, 0.4994258
        %v349 = vmul.f32 %v329, %v348
        %v350 = vadd.f32 %v349, 1.0
        %v351 = vrcp.pop %v350
        %v352 = vmul.f32 %v350, %v351
        %v353 = vsub.f32 1.0, %v352
        %v354 = vmul.f32 %v351, %v353
        %v355 = vadd.f32 %v351, %v354
        %vm356 = vweird.f32 %v350
        %vm357 = vweird.f32 %v351
        %vm358 = vmor %vm356, %vm357
        %v359 = vsel %vm358, %v351, %v355
        %v360 = vand.u32 2147483647, %v350
        %vm361 = vcmp.eq.f32.partialorder %v360, 8.507059e+37
        %v362 = vand.u32 %v350, 2147483648
        %v363 = vor.u32 1.1754944e-38, %v362
        %v364 = vsel %vm361, %v363, %v359
        %v365 = vmul.f32 %v340, %v364
        %v366 = vmin.f32 %v365, 1.0
        %v367 = vmax.f32 %v366, -1.0
        %v368 = vmul.f32 %v325, %v325
        %v369 = vmin.f32 16.0, %v368
        %v370 = vmul.f32 %v369, 2.1237322e-06
        %v371 = vadd.f32 %v370, 0.00028619796
        %v372 = vmul.f32 %v369, %v371
        %v373 = vadd.f32 %v372, 0.0036580483
        %v374 = vmul.f32 %v369, %v373
        %v375 = vadd.f32 %v374, 0.05243302
        %v376 = vmul.f32 %v369, %v375
        %v377 = vadd.f32 %v376, 0.18741608
        %v378 = vmul.f32 %v369, %v377
        %v379 = vadd.f32 %v378, 1.1283791
        %v380 = vmul.f32 %v325, %v379
        %v381 = vmul.f32 %v369, 3.8918573e-05
        %v382 = vadd.f32 %v381, 0.001143296
        %v383 = vmul.f32 %v369, %v382
        %v384 = vadd.f32 %v383, 0.014752088
        %v385 = vmul.f32 %v369, %v384
        %v386 = vadd.f32 %v385, 0.112945676
        %v387 = vmul.f32 %v369, %v386
        %v388 = vadd.f32 %v387, 0.4994258
        %v389 = vmul.f32 %v369, %v388
        %v390 = vadd.f32 %v389, 1.0
        %v391 = vrcp.pop %v390
        %v392 = vmul.f32 %v390, %v391
        %v393 = vsub.f32 1.0, %v392
        %v394 = vmul.f32 %v391, %v393
        %v395 = vadd.f32 %v391, %v394
        %vm396 = vweird.f32 %v390
        %vm397 = vweird.f32 %v391
        %vm398 = vmor %vm396, %vm397
        %v399 = vsel %vm398, %v391, %v395
        %v400 = vand.u32 2147483647, %v390
        %vm401 = vcmp.eq.f32.partialorder %v400, 8.507059e+37
        %v402 = vand.u32 %v390, 2147483648
        %v403 = vor.u32 1.1754944e-38, %v402
        %v404 = vsel %vm401, %v403, %v399
        %v405 = vmul.f32 %v380, %v404
        %v406 = vmin.f32 %v405, 1.0
        %v407 = vmax.f32 %v406, -1.0
        %v408 = vmul.f32 %v326, %v326
        %v409 = vmin.f32 16.0, %v408
        %v410 = vmul.f32 %v409, 2.1237322e-06
        %v411 = vadd.f32 %v410, 0.00028619796
        %v412 = vmul.f32 %v409, %v411
        %v413 = vadd.f32 %v412, 0.0036580483
        %v414 = vmul.f32 %v409, %v413
        %v415 = vadd.f32 %v414, 0.05243302
        %v416 = vmul.f32 %v409, %v415
        %v417 = vadd.f32 %v416, 0.18741608
        %v418 = vmul.f32 %v409, %v417
        %v419 = vadd.f32 %v418, 1.1283791
        %v420 = vmul.f32 %v326, %v419
        %v421 = vmul.f32 %v409, 3.8918573e-05
        %v422 = vadd.f32 %v421, 0.001143296
        %v423 = vmul.f32 %v409, %v422
        %v424 = vadd.f32 %v423, 0.014752088
        %v425 = vmul.f32 %v409, %v424
        %v426 = vadd.f32 %v425, 0.112945676
        %v427 = vmul.f32 %v409, %v426
        %v428 = vadd.f32 %v427, 0.4994258
        %v429 = vmul.f32 %v409, %v428
        %v430 = vadd.f32 %v429, 1.0
        %v431 = vrcp.pop %v430
        %v432 = vmul.f32 %v430, %v431
        %v433 = vsub.f32 1.0, %v432
        %v434 = vmul.f32 %v431, %v433
        %v435 = vadd.f32 %v431, %v434
        %vm436 = vweird.f32 %v430
        %vm437 = vweird.f32 %v431
        %vm438 = vmor %vm436, %vm437
        %v439 = vsel %vm438, %v431, %v435
        %v440 = vand.u32 2147483647, %v430
        %vm441 = vcmp.eq.f32.partialorder %v440, 8.507059e+37
        %v442 = vand.u32 %v430, 2147483648
        %v443 = vor.u32 1.1754944e-38, %v442
        %v444 = vsel %vm441, %v443, %v439
        %v445 = vmul.f32 %v420, %v444
        %v446 = vmin.f32 %v445, 1.0
        %v447 = vmax.f32 %v446, -1.0
        %v448 = vmul.f32 %v327, %v327
        %v449 = vmin.f32 16.0, %v448
        %v450 = vmul.f32 %v449, 2.1237322e-06
        %v451 = vadd.f32 %v450, 0.00028619796
        %v452 = vmul.f32 %v449, %v451
        %v453 = vadd.f32 %v452, 0.0036580483
        %v454 = vmul.f32 %v449, %v453
        %v455 = vadd.f32 %v454, 0.05243302
        %v456 = vmul.f32 %v449, %v455
        %v457 = vadd.f32 %v456, 0.18741608
        %v458 = vmul.f32 %v449, %v457
        %v459 = vadd.f32 %v458, 1.1283791
        %v460 = vmul.f32 %v327, %v459
        %v461 = vmul.f32 %v449, 3.8918573e-05
        %v462 = vadd.f32 %v461, 0.001143296
        %v463 = vmul.f32 %v449, %v462
        %v464 = vadd.f32 %v463, 0.014752088
        %v465 = vmul.f32 %v449, %v464
        %v466 = vadd.f32 %v465, 0.112945676
        %v467 = vmul.f32 %v449, %v466
        %v468 = vadd.f32 %v467, 0.4994258
        %v469 = vmul.f32 %v449, %v468
        %v470 = vadd.f32 %v469, 1.0
        %v471 = vrcp.pop %v470
        %v472 = vmul.f32 %v470, %v471
        %v473 = vsub.f32 1.0, %v472
        %v474 = vmul.f32 %v471, %v473
        %v475 = vadd.f32 %v471, %v474
        %vm476 = vweird.f32 %v470
        %vm477 = vweird.f32 %v471
        %vm478 = vmor %vm476, %vm477
        %v479 = vsel %vm478, %v471, %v475
        %v480 = vand.u32 2147483647, %v470
        %vm481 = vcmp.eq.f32.partialorder %v480, 8.507059e+37
        %v482 = vand.u32 %v470, 2147483648
        %v483 = vor.u32 1.1754944e-38, %v482
        %v484 = vsel %vm481, %v483, %v479
        %v485 = vmul.f32 %v460, %v484
        %v486 = vmin.f32 %v485, 1.0
        %v487 = vmax.f32 %v486, -1.0
        %v488 = vadd.f32 %v367, 1.0
        %v489 = vadd.f32 %v407, 1.0
        %v490 = vadd.f32 %v447, 1.0
        %v491 = vadd.f32 %v487, 1.0
        %v492 = vmul.f32 %v320, %v488
        %v493 = vmul.f32 %v321, %v489
        %v494 = vmul.f32 %v322, %v490
        %v495 = vmul.f32 %v323, %v491
        %v496 = vld [vmem:[%s3] sm:$0xff]
        %v497 = vld [vmem:[%s3 + $0x8] sm:$0xff]
        %v498 = vld [vmem:[%s4] sm:$0xff]
        %v499 = vld [vmem:[%s4 + $0x8] sm:$0xff]
        %501 = vset.pattern.permute.xlu0 0
        %502 = vperm.xlu0 %501, %v498
        %v503 = vpop.permute.xlu0 %502
        %506 = vset.pattern.permute.xlu0 0
        %507 = vperm.xlu0 %506, %v499
        %v508 = vpop.permute.xlu0 %507
        %vm510 = vcmask 261120
        %v512 = vsel %vm510, %v496, 0
        %v515 = vsel %vm510, %v497, 0
        %517 = vmatpush.msra.mxu0 0.0
        %518 = vmatpush.msra.mxu0 0.0
        %519 = vmatpush.msra.mxu0 0.0
        %520 = vmatpush.msra.mxu0 0.0
        %521 = vmatpush.msra.mxu0 0.0
        %522 = vmatpush.msra.mxu0 0.0
        %523 = vmatpush.msra.mxu0 0.0
        %524 = vmatpush.msra.mxu0 0.0
        %525 = vmatpush.msra.mxu0 0.0
        %526 = vmatpush.msra.mxu0 0.0
        %527 = vmatpush.msra.mxu0 0.0
        %528 = vmatpush.msra.mxu0 0.0
        %529 = vmatpush.msra.mxu0 %v495
        %530 = vmatpush.msra.mxu0 %v494
        %531 = vmatpush.msra.mxu0 %v493
        %532 = vmatpush.msra.mxu0 %v492
        %533 = vmatmul.f32.gmra.mxu0 %v512
        %v534 = vpop.f32.mrf.mxu0
        %v535 = vadd.f32 %v503, %v534
        %536 = vmatmul.f32.gmra.mxu0 %v515
        %v537 = vpop.f32.mrf.mxu0
        %v538 = vadd.f32 %v508, %v537
        %539 = vdwg.mxu0
        %vm540 = vcmask 523264
        %541 = vst.msk [vmem:[%s239] sm:$0xff] %vm540, %v535
        %542 = vst.msk [vmem:[%s239 + $0x8] sm:$0xff] %vm540, %v538
        %s543 = sand.u32 %s153, 1
        %s544 = scalar_lea.sflag [#allocation3], %s543
        %s545 = sand.u32 %s153, 1
        %s546 = smul.addr %s545, 16
        %s547 = scalar_lea.vmem [#allocation2], %s546
        // Predicated region
        $region41: #{tpu_custom_call.1} parent=39 // pred_check
          %p548 = pneg %p163
        $region42: #{tpu_custom_call.1} parent=39 // pred_check_branch
          %550 = sbr.rel (%p548) target = $region44
        $region43: #{tpu_custom_call.1} parent=39 // pred_region
          %552 = vsyncadd %s544, 0
          %s553 = smul.addr %s23, 2
          %s554 = sadd.s32 %s24, %s553
          %s555 = smul.addr %s554, 8
          %s556 = scalar_lea.hbm %s5, %s555
          %s557 = sshll.u32 %s547, 4
          %s558 = int_to_ptr.vmem [resolvable:$true] %s557
          %s559 = sshll.u32 %s556, 4
          %s560 = int_to_ptr.hbm [resolvable:$true] %s559
          %565 = dma.vmem_to_hbm [thread:$0]  %s558, 256, %s560, %s544, 128, 128, 8
        $region44: #{tpu_custom_call.1} parent=39 // pred_fallthru
          _
      $region40: #{tpu_custom_call.1} parent=5 // pred_fallthru
        _
      %p566 = scmp.le.s32.totalorder 2, %s14
      // Predicated region
      $region45: #{tpu_custom_call.1} parent=5 // pred_check
        %p567 = pneg %p566
      $region46: #{tpu_custom_call.1} parent=5 // pred_check_branch
        %569 = sbr.rel (%p567) target = $region48
      $region47: #{tpu_custom_call.1} parent=5 // pred_region
        %s570 = ssub.s32 %s14, 2
        // Predicated region
        $region49: #{tpu_custom_call.1} parent=47 // pred_check
          %p571 = pneg %p169
        $region50: #{tpu_custom_call.1} parent=47 // pred_check_branch
          %573 = sbr.rel (%p571) target = $region52
        $region51: #{tpu_custom_call.1} parent=47 // pred_region
          %s574 = sand.u32 %s154, 1
          %s575 = scalar_lea.sflag [#allocation3], %s574
          %s576 = sand.u32 %s154, 1
          %s577 = smul.addr %s576, 16
          %s578 = scalar_lea.vmem [#allocation2], %s577
          %580 = dma.done %s575, 256
        $region52: #{tpu_custom_call.1} parent=47 // pred_fallthru
          _
      $region48: #{tpu_custom_call.1} parent=5 // pred_fallthru
        _
    $region6: #{tpu_custom_call.1} parent=1 // loop_footer
      %s18 = sadd.s32 1, %s14
    $region7: #{tpu_custom_call.1} parent=1 // loop_footer_branch
      %13 = sbr.rel target = $region3
    $region8: #{tpu_custom_call.1} parent=1 // loop_exit
      _
    %581 = vsyncpa [#allocation3], 1
    %s582 = scalar_lea.sflag [#allocation3], 1
    %583 = vsyncpa %s582, 1

</llo_original>
